<compile_context>
chip_gen: v7x
topology: tpu7x:2x2x1
jax: 0.10.0
libtpu: 0.0.40
codegen_flags: <defaults>
</compile_context>

<pallas_src>
import functools
import math

import jax
import jax.numpy as jnp
from jax.experimental import pallas as pl
from jax.experimental.pallas import tpu as pltpu

LANE = 128
HEAD = 128          # fused mean|log_var head width (one lane-dense vreg)
HALF = HEAD // 2    # mean -> lanes [0, latent), log_var -> lanes [HALF, HALF+latent)


def _rup(n, m=LANE):
    return ((n + m - 1) // m) * m


# ----------------------------------------------------------------------------
# Fused Pallas kernel: whole VAE forward in one body
# ----------------------------------------------------------------------------
def _vae_fused_kernel(*refs, enc_dim, dec_dim):
    it = iter(refs)
    x_ref, eps_ref = next(it), next(it)
    w_in, b_in = next(it), next(it)
    enc_wb = [(next(it), next(it)) for _ in range(enc_dim)]
    w_head, b_head = next(it), next(it)            # fused mean|log_var head [node_p, 128]
    w_z, b_z = next(it), next(it)
    dec_wb = [(next(it), next(it)) for _ in range(dec_dim)]
    w_out, b_out = next(it), next(it)
    xhat_ref, head_ref = next(it), next(it)

    f32, bf16 = jnp.float32, jnp.bfloat16

    def dense(a, w_ref, b_ref):
        # bf16 operands (MXU-native on v6e/v7x), f32 accumulation, f32 epilogue.
        return jnp.dot(a.astype(bf16), w_ref[...], preferred_element_type=f32) + b_ref[...]

    # ---- Encoder ----
    h = jnp.maximum(dense(x_ref[...], w_in, b_in), 0.0)
    for w, b in enc_wb:
        h = jnp.maximum(dense(h, w, b), 0.0)

    # ---- Fused mean|log_var head (single 128-lane matmul) + reparameterization ----
    head = dense(h, w_head, b_head)                # (TB, 128)
    head_ref[...] = head.astype(head_ref.dtype)
    mean = head[:, :HALF]                          # real mean in lanes [0, latent), pad = 0
    log_var = head[:, HALF:]                       # real log_var in lanes [0, latent), pad = 0
    # Padded lanes stay 0: log_var pad = 0 -> exp = 1, eps pad = 0 -> contributes 0.
    z = mean + jnp.exp(0.5 * log_var) * eps_ref[...]

    # ---- Decoder ----
    hd = jnp.maximum(dense(z, w_z, b_z), 0.0)
    for w, b in dec_wb:
        hd = jnp.maximum(dense(hd, w, b), 0.0)
    out = dense(hd, w_out, b_out)
    xhat_ref[...] = jax.nn.sigmoid(out).astype(xhat_ref.dtype)


# ----------------------------------------------------------------------------
# Parameter construction (PyTorch-default-style uniform init, [in, out] layout)
# ----------------------------------------------------------------------------
def init_linear(key, in_dim, out_dim, dtype=jnp.float32):
    kw, kb = jax.random.split(key)
    bound = 1.0 / jnp.sqrt(jnp.float32(in_dim))
    w = jax.random.uniform(kw, (in_dim, out_dim), dtype, -bound, bound)
    b = jax.random.uniform(kb, (1, out_dim), dtype, -bound, bound)
    return w, b


def build_params(key, enc_dim, dec_dim, input_dim, latent_dim, node_count):
    params = {"enc": {}, "dec": {}}
    keys = jax.random.split(key, 2 * (enc_dim + dec_dim) + 8)
    k = iter(keys)

    params["enc"]["input"] = init_linear(next(k), input_dim, node_count)
    for i in range(enc_dim):
        params["enc"][f"enc_{i + 1}"] = init_linear(next(k), node_count, node_count)
    params["enc"]["mean"] = init_linear(next(k), node_count, latent_dim)
    params["enc"]["var"] = init_linear(next(k), node_count, latent_dim)

    params["dec"]["z"] = init_linear(next(k), latent_dim, node_count)
    for i in range(dec_dim):
        params["dec"][f"dec_{i + 1}"] = init_linear(next(k), node_count, node_count)
    params["dec"]["output"] = init_linear(next(k), node_count, input_dim)
    return params


def pad_params(params, enc_dim, dec_dim, input_dim, latent_dim, node_count):
    """Zero-pad every weight/bias to lane-dense (128-multiple) feature dims.
    Weights -> bf16 (MXU operands), biases -> f32 (added after f32 accumulation).
    Built once outside the jitted hot path."""
    assert 2 * latent_dim <= HEAD, "fused head assumes latent_dim <= 64; widen HEAD otherwise"
    ip, npad = _rup(input_dim), _rup(node_count)

    def pad_wb(wb, rin, cout):
        w, b = wb
        wp = jnp.pad(w, ((0, rin - w.shape[0]), (0, cout - w.shape[1]))).astype(jnp.bfloat16)
        bp = jnp.pad(b, ((0, 0), (0, cout - b.shape[1]))).astype(jnp.float32)
        return [wp, bp]

    flat = []
    flat += pad_wb(params["enc"]["input"], ip, npad)
    for i in range(enc_dim):
        flat += pad_wb(params["enc"][f"enc_{i + 1}"], npad, npad)

    # Fused mean/log_var head: mean -> cols [0, latent), log_var -> cols [HALF, HALF+latent).
    wm, bm = params["enc"]["mean"]
    wv, bv = params["enc"]["var"]
    w_head = jnp.zeros((npad, HEAD), jnp.float32)
    w_head = w_head.at[: wm.shape[0], :latent_dim].set(wm)
    w_head = w_head.at[: wv.shape[0], HALF:HALF + latent_dim].set(wv)
    b_head = jnp.zeros((1, HEAD), jnp.float32)
    b_head = b_head.at[:, :latent_dim].set(bm)
    b_head = b_head.at[:, HALF:HALF + latent_dim].set(bv)
    flat += [w_head.astype(jnp.bfloat16), b_head]

    flat += pad_wb(params["dec"]["z"], HALF, npad)
    for i in range(dec_dim):
        flat += pad_wb(params["dec"][f"dec_{i + 1}"], npad, npad)
    flat += pad_wb(params["dec"]["output"], npad, ip)
    return flat


# ----------------------------------------------------------------------------
# Forward pass (single fused, jitted pallas_call; optional batch-tiled grid)
# ----------------------------------------------------------------------------
def make_vae_forward(enc_dim, dec_dim, input_dim, latent_dim, node_count, batch_tile=128):
    ip, npad = _rup(input_dim), _rup(node_count)
    kernel = functools.partial(_vae_fused_kernel, enc_dim=enc_dim, dec_dim=dec_dim)

    # (K, N) of every matmul, for the cost estimate.
    layer_kn = ([(ip, npad)] + [(npad, npad)] * enc_dim + [(npad, HEAD), (HALF, npad)]
                + [(npad, npad)] * dec_dim + [(npad, ip)])

    @jax.jit
    def fwd(padded_params, x, eps):
        B = x.shape[0]
        x_pad = jnp.pad(x.astype(jnp.float32), ((0, 0), (0, ip - x.shape[1])))
        eps_pad = jnp.pad(eps.astype(jnp.float32), ((0, 0), (0, HALF - eps.shape[1])))
        inputs = [x_pad, eps_pad, *padded_params]

        # Explicit VMEM budget for the all-weights-resident design (v7x has the
        # smallest VMEM: 64 MiB physical / 32 MiB scoped default).
        resident = sum(math.prod(a.shape) * a.dtype.itemsize for a in inputs)
        resident += (B * ip + B * HEAD) * 4  # f32 outputs
        if 3 * resident > 48 * 1024 * 1024:
            raise ValueError("resident VMEM footprint too large for v7x; tile layers instead")
        vmem_limit = int(min(32 * 1024 * 1024, max(16 * 1024 * 1024, 6 * resident)))

        flops = 2 * B * sum(k * n for k, n in layer_kn)
        cost = pl.CostEstimate(flops=flops,
                               transcendentals=B * (HALF + ip),
                               bytes_accessed=resident)

        out_shape = (jax.ShapeDtypeStruct((B, ip), jnp.float32),
                     jax.ShapeDtypeStruct((B, HEAD), jnp.float32))

        use_grid = bool(batch_tile) and B % batch_tile == 0 and B // batch_tile >= 2
        if use_grid:
            # Batch-tiled grid: weights index-map to (0,0) every step (stay VMEM-
            # resident, no re-DMA); "parallel" lets v7x's 2 TCs split the batch.
            def act(cols):
                return pl.BlockSpec((batch_tile, cols), lambda i: (i, 0))

            def const(shape):
                return pl.BlockSpec(shape, lambda i: (0,) * len(shape))

            in_specs = [act(ip), act(HALF)] + [const(p.shape) for p in padded_params]
            xhat_p, head_p = pl.pallas_call(
                kernel,
                out_shape=out_shape,
                grid=(B // batch_tile,),
                in_specs=in_specs,
                out_specs=(act(ip), act(HEAD)),
                compiler_params=pltpu.CompilerParams(
                    dimension_semantics=("parallel",),
                    vmem_limit_bytes=vmem_limit),
                cost_estimate=cost,
            )(*inputs)
        else:
            # Single invocation, whole arrays resident in VMEM (best at small B).
            vmem = pl.BlockSpec(memory_space=pltpu.MemorySpace.VMEM)
            xhat_p, head_p = pl.pallas_call(
                kernel,
                out_shape=out_shape,
                in_specs=[vmem] * len(inputs),
                out_specs=(vmem, vmem),
                compiler_params=pltpu.CompilerParams(vmem_limit_bytes=vmem_limit),
                cost_estimate=cost,
            )(*inputs)

        # Slice padded lanes back off (mean / log_var halves of the fused head).
        return (xhat_p[:, :input_dim],
                head_p[:, :latent_dim],
                head_p[:, HALF:HALF + latent_dim])

    return fwd


# ----------------------------------------------------------------------------
# Pure-JAX reference with matching bf16-operand / f32-accumulate semantics
# ----------------------------------------------------------------------------
def _reference_forward(params, x, eps, enc_dim, dec_dim):
    f32, bf16 = jnp.float32, jnp.bfloat16

    def dense(a, wb):
        w, b = wb
        return jnp.dot(a.astype(bf16), w.astype(bf16), preferred_element_type=f32) + b

    h = jnp.maximum(dense(x, params["enc"]["input"]), 0.0)
    for i in range(enc_dim):
        h = jnp.maximum(dense(h, params["enc"][f"enc_{i + 1}"]), 0.0)
    mean = dense(h, params["enc"]["mean"])
    log_var = dense(h, params["enc"]["var"])
    z = mean + jnp.exp(0.5 * log_var) * eps
    hd = jnp.maximum(dense(z, params["dec"]["z"]), 0.0)
    for i in range(dec_dim):
        hd = jnp.maximum(dense(hd, params["dec"][f"dec_{i + 1}"]), 0.0)
    x_hat = jax.nn.sigmoid(dense(hd, params["dec"]["output"]))
    return x_hat, mean, log_var


# ----------------------------------------------------------------------------
# Main
# ----------------------------------------------------------------------------
if __name__ == "__main__":
    batch = 8
    input_dim = 64     # == output_dim of the decoder
    node_count = 32
    latent_dim = 8
    enc_dim = 2
    dec_dim = 2

    root = jax.random.PRNGKey(0)
    k_params, k_x, k_eps, k_xb, k_epsb = jax.random.split(root, 5)

    params = build_params(k_params, enc_dim, dec_dim, input_dim, latent_dim, node_count)
    padded = pad_params(params, enc_dim, dec_dim, input_dim, latent_dim, node_count)
    fwd = make_vae_forward(enc_dim, dec_dim, input_dim, latent_dim, node_count)

    x = jax.random.normal(k_x, (batch, input_dim), jnp.float32)
    # epsilon ~ N(0,1), same shape as latent (matches torch.randn_like(var))
    eps = jax.random.normal(k_eps, (batch, latent_dim), jnp.float32)

    # Small-batch path (gridless, single fused invocation).
    x_hat, mean, log_var = fwd(padded, x, eps)
    jax.block_until_ready((x_hat, mean, log_var))

    xr, mr, lr = _reference_forward(params, x, eps, enc_dim, dec_dim)
    assert jnp.allclose(mean, mr, atol=5e-3, rtol=5e-3)
    assert jnp.allclose(log_var, lr, atol=5e-3, rtol=5e-3)
    assert jnp.allclose(x_hat, xr, atol=5e-3, rtol=5e-3)

    # Large-batch path: exercises the batch-tiled "parallel" grid (v7x megacore).
    big_b = 256
    xb = jax.random.normal(k_xb, (big_b, input_dim), jnp.float32)
    epsb = jax.random.normal(k_epsb, (big_b, latent_dim), jnp.float32)
    xb_hat, mb, lb = fwd(padded, xb, epsb)
    jax.block_until_ready((xb_hat, mb, lb))

    xrb, mrb, lrb = _reference_forward(params, xb, epsb, enc_dim, dec_dim)
    assert jnp.allclose(mb, mrb, atol=5e-3, rtol=5e-3)
    assert jnp.allclose(lb, lrb, atol=5e-3, rtol=5e-3)
    assert jnp.allclose(xb_hat, xrb, atol=5e-3, rtol=5e-3)

    print("KERNEL_OK")
</pallas_src>

<mosaic_0001>
module attributes {stable_mosaic.version = 11 : i64} {
  func.func @_vae_fused_kernel(%arg0: memref<8x128xf32, #tpu.memory_space<vmem>>, %arg1: memref<8x64xf32, #tpu.memory_space<vmem>>, %arg2: memref<128x128xbf16, #tpu.memory_space<vmem>>, %arg3: memref<1x128xf32, #tpu.memory_space<vmem>>, %arg4: memref<128x128xbf16, #tpu.memory_space<vmem>>, %arg5: memref<1x128xf32, #tpu.memory_space<vmem>>, %arg6: memref<128x128xbf16, #tpu.memory_space<vmem>>, %arg7: memref<1x128xf32, #tpu.memory_space<vmem>>, %arg8: memref<128x128xbf16, #tpu.memory_space<vmem>>, %arg9: memref<1x128xf32, #tpu.memory_space<vmem>>, %arg10: memref<64x128xbf16, #tpu.memory_space<vmem>>, %arg11: memref<1x128xf32, #tpu.memory_space<vmem>>, %arg12: memref<128x128xbf16, #tpu.memory_space<vmem>>, %arg13: memref<1x128xf32, #tpu.memory_space<vmem>>, %arg14: memref<128x128xbf16, #tpu.memory_space<vmem>>, %arg15: memref<1x128xf32, #tpu.memory_space<vmem>>, %arg16: memref<128x128xbf16, #tpu.memory_space<vmem>>, %arg17: memref<1x128xf32, #tpu.memory_space<vmem>>, %arg18: memref<8x128xf32, #tpu.memory_space<vmem>>, %arg19: memref<8x128xf32, #tpu.memory_space<vmem>>) attributes {dimension_semantics = [], scalar_prefetch = 0 : i64, scratch_operands = 0 : i64, tpu.core_type = #tpu.core_type<tc>} {
    %c0 = arith.constant 0 : index
    %c0_0 = arith.constant 0 : index
    %0 = vector.load %arg0[%c0, %c0_0] : memref<8x128xf32, #tpu.memory_space<vmem>>, vector<8x128xf32>
    %1 = arith.truncf %0 : vector<8x128xf32> to vector<8x128xbf16>
    %c0_1 = arith.constant 0 : index
    %c0_2 = arith.constant 0 : index
    %2 = vector.load %arg2[%c0_1, %c0_2] : memref<128x128xbf16, #tpu.memory_space<vmem>>, vector<128x128xbf16>
    %cst = arith.constant dense<0.000000e+00> : vector<8x128xf32>
    %3 = tpu.matmul %1, %2, %cst {dimension_numbers = #tpu.dot_dimension_numbers<[1], [0], [0], [1], [0, 0, 1, 1], [], []>} : vector<8x128xbf16>, vector<128x128xbf16>, vector<8x128xf32> -> vector<8x128xf32>
    %c0_3 = arith.constant 0 : index
    %c0_4 = arith.constant 0 : index
    %4 = vector.load %arg3[%c0_3, %c0_4] : memref<1x128xf32, #tpu.memory_space<vmem>>, vector<1x128xf32>
    %5 = vector.broadcast %4 : vector<1x128xf32> to vector<8x128xf32>
    %6 = arith.addf %3, %5 : vector<8x128xf32>
    %cst_5 = arith.constant 0.000000e+00 : f32
    %7 = vector.broadcast %cst_5 : f32 to vector<8x128xf32>
    %8 = arith.maximumf %6, %7 : vector<8x128xf32>
    %9 = arith.truncf %8 : vector<8x128xf32> to vector<8x128xbf16>
    %c0_6 = arith.constant 0 : index
    %c0_7 = arith.constant 0 : index
    %10 = vector.load %arg4[%c0_6, %c0_7] : memref<128x128xbf16, #tpu.memory_space<vmem>>, vector<128x128xbf16>
    %cst_8 = arith.constant dense<0.000000e+00> : vector<8x128xf32>
    %11 = tpu.matmul %9, %10, %cst_8 {dimension_numbers = #tpu.dot_dimension_numbers<[1], [0], [0], [1], [0, 0, 1, 1], [], []>} : vector<8x128xbf16>, vector<128x128xbf16>, vector<8x128xf32> -> vector<8x128xf32>
    %c0_9 = arith.constant 0 : index
    %c0_10 = arith.constant 0 : index
    %12 = vector.load %arg5[%c0_9, %c0_10] : memref<1x128xf32, #tpu.memory_space<vmem>>, vector<1x128xf32>
    %13 = vector.broadcast %12 : vector<1x128xf32> to vector<8x128xf32>
    %14 = arith.addf %11, %13 : vector<8x128xf32>
    %cst_11 = arith.constant 0.000000e+00 : f32
    %15 = vector.broadcast %cst_11 : f32 to vector<8x128xf32>
    %16 = arith.maximumf %14, %15 : vector<8x128xf32>
    %17 = arith.truncf %16 : vector<8x128xf32> to vector<8x128xbf16>
    %c0_12 = arith.constant 0 : index
    %c0_13 = arith.constant 0 : index
    %18 = vector.load %arg6[%c0_12, %c0_13] : memref<128x128xbf16, #tpu.memory_space<vmem>>, vector<128x128xbf16>
    %cst_14 = arith.constant dense<0.000000e+00> : vector<8x128xf32>
    %19 = tpu.matmul %17, %18, %cst_14 {dimension_numbers = #tpu.dot_dimension_numbers<[1], [0], [0], [1], [0, 0, 1, 1], [], []>} : vector<8x128xbf16>, vector<128x128xbf16>, vector<8x128xf32> -> vector<8x128xf32>
    %c0_15 = arith.constant 0 : index
    %c0_16 = arith.constant 0 : index
    %20 = vector.load %arg7[%c0_15, %c0_16] : memref<1x128xf32, #tpu.memory_space<vmem>>, vector<1x128xf32>
    %21 = vector.broadcast %20 : vector<1x128xf32> to vector<8x128xf32>
    %22 = arith.addf %19, %21 : vector<8x128xf32>
    %cst_17 = arith.constant 0.000000e+00 : f32
    %23 = vector.broadcast %cst_17 : f32 to vector<8x128xf32>
    %24 = arith.maximumf %22, %23 : vector<8x128xf32>
    %25 = arith.truncf %24 : vector<8x128xf32> to vector<8x128xbf16>
    %c0_18 = arith.constant 0 : index
    %c0_19 = arith.constant 0 : index
    %26 = vector.load %arg8[%c0_18, %c0_19] : memref<128x128xbf16, #tpu.memory_space<vmem>>, vector<128x128xbf16>
    %cst_20 = arith.constant dense<0.000000e+00> : vector<8x128xf32>
    %27 = tpu.matmul %25, %26, %cst_20 {dimension_numbers = #tpu.dot_dimension_numbers<[1], [0], [0], [1], [0, 0, 1, 1], [], []>} : vector<8x128xbf16>, vector<128x128xbf16>, vector<8x128xf32> -> vector<8x128xf32>
    %c0_21 = arith.constant 0 : index
    %c0_22 = arith.constant 0 : index
    %28 = vector.load %arg9[%c0_21, %c0_22] : memref<1x128xf32, #tpu.memory_space<vmem>>, vector<1x128xf32>
    %29 = vector.broadcast %28 : vector<1x128xf32> to vector<8x128xf32>
    %30 = arith.addf %27, %29 : vector<8x128xf32>
    %c0_23 = arith.constant 0 : index
    %c0_24 = arith.constant 0 : index
    %31 = vector.load %arg19[%c0_23, %c0_24] : memref<8x128xf32, #tpu.memory_space<vmem>>, vector<8x128xf32>
    tpu.vector_store %arg19[%c0_23, %c0_24], %30 {strides = array<i32>} : memref<8x128xf32, #tpu.memory_space<vmem>>, vector<8x128xf32>,
    %32 = vector.extract_strided_slice %30 {offsets = [0, 0], sizes = [8, 64], strides = [1, 1]} : vector<8x128xf32> to vector<8x64xf32>
    %33 = vector.extract_strided_slice %30 {offsets = [0, 64], sizes = [8, 64], strides = [1, 1]} : vector<8x128xf32> to vector<8x64xf32>
    %cst_25 = arith.constant 5.000000e-01 : f32
    %34 = vector.broadcast %cst_25 : f32 to vector<8x64xf32>
    %35 = arith.mulf %34, %33 : vector<8x64xf32>
    %36 = math.exp %35 : vector<8x64xf32>
    %c0_26 = arith.constant 0 : index
    %c0_27 = arith.constant 0 : index
    %37 = vector.load %arg1[%c0_26, %c0_27] : memref<8x64xf32, #tpu.memory_space<vmem>>, vector<8x64xf32>
    %38 = arith.mulf %36, %37 : vector<8x64xf32>
    %39 = arith.addf %32, %38 : vector<8x64xf32>
    %40 = arith.truncf %39 : vector<8x64xf32> to vector<8x64xbf16>
    %c0_28 = arith.constant 0 : index
    %c0_29 = arith.constant 0 : index
    %41 = vector.load %arg10[%c0_28, %c0_29] : memref<64x128xbf16, #tpu.memory_space<vmem>>, vector<64x128xbf16>
    %cst_30 = arith.constant dense<0.000000e+00> : vector<8x128xf32>
    %42 = tpu.matmul %40, %41, %cst_30 {dimension_numbers = #tpu.dot_dimension_numbers<[1], [0], [0], [1], [0, 0, 1, 1], [], []>} : vector<8x64xbf16>, vector<64x128xbf16>, vector<8x128xf32> -> vector<8x128xf32>
    %c0_31 = arith.constant 0 : index
    %c0_32 = arith.constant 0 : index
    %43 = vector.load %arg11[%c0_31, %c0_32] : memref<1x128xf32, #tpu.memory_space<vmem>>, vector<1x128xf32>
    %44 = vector.broadcast %43 : vector<1x128xf32> to vector<8x128xf32>
    %45 = arith.addf %42, %44 : vector<8x128xf32>
    %cst_33 = arith.constant 0.000000e+00 : f32
    %46 = vector.broadcast %cst_33 : f32 to vector<8x128xf32>
    %47 = arith.maximumf %45, %46 : vector<8x128xf32>
    %48 = arith.truncf %47 : vector<8x128xf32> to vector<8x128xbf16>
    %c0_34 = arith.constant 0 : index
    %c0_35 = arith.constant 0 : index
    %49 = vector.load %arg12[%c0_34, %c0_35] : memref<128x128xbf16, #tpu.memory_space<vmem>>, vector<128x128xbf16>
    %cst_36 = arith.constant dense<0.000000e+00> : vector<8x128xf32>
    %50 = tpu.matmul %48, %49, %cst_36 {dimension_numbers = #tpu.dot_dimension_numbers<[1], [0], [0], [1], [0, 0, 1, 1], [], []>} : vector<8x128xbf16>, vector<128x128xbf16>, vector<8x128xf32> -> vector<8x128xf32>
    %c0_37 = arith.constant 0 : index
    %c0_38 = arith.constant 0 : index
    %51 = vector.load %arg13[%c0_37, %c0_38] : memref<1x128xf32, #tpu.memory_space<vmem>>, vector<1x128xf32>
    %52 = vector.broadcast %51 : vector<1x128xf32> to vector<8x128xf32>
    %53 = arith.addf %50, %52 : vector<8x128xf32>
    %cst_39 = arith.constant 0.000000e+00 : f32
    %54 = vector.broadcast %cst_39 : f32 to vector<8x128xf32>
    %55 = arith.maximumf %53, %54 : vector<8x128xf32>
    %56 = arith.truncf %55 : vector<8x128xf32> to vector<8x128xbf16>
    %c0_40 = arith.constant 0 : index
    %c0_41 = arith.constant 0 : index
    %57 = vector.load %arg14[%c0_40, %c0_41] : memref<128x128xbf16, #tpu.memory_space<vmem>>, vector<128x128xbf16>
    %cst_42 = arith.constant dense<0.000000e+00> : vector<8x128xf32>
    %58 = tpu.matmul %56, %57, %cst_42 {dimension_numbers = #tpu.dot_dimension_numbers<[1], [0], [0], [1], [0, 0, 1, 1], [], []>} : vector<8x128xbf16>, vector<128x128xbf16>, vector<8x128xf32> -> vector<8x128xf32>
    %c0_43 = arith.constant 0 : index
    %c0_44 = arith.constant 0 : index
    %59 = vector.load %arg15[%c0_43, %c0_44] : memref<1x128xf32, #tpu.memory_space<vmem>>, vector<1x128xf32>
    %60 = vector.broadcast %59 : vector<1x128xf32> to vector<8x128xf32>
    %61 = arith.addf %58, %60 : vector<8x128xf32>
    %cst_45 = arith.constant 0.000000e+00 : f32
    %62 = vector.broadcast %cst_45 : f32 to vector<8x128xf32>
    %63 = arith.maximumf %61, %62 : vector<8x128xf32>
    %64 = arith.truncf %63 : vector<8x128xf32> to vector<8x128xbf16>
    %c0_46 = arith.constant 0 : index
    %c0_47 = arith.constant 0 : index
    %65 = vector.load %arg16[%c0_46, %c0_47] : memref<128x128xbf16, #tpu.memory_space<vmem>>, vector<128x128xbf16>
    %cst_48 = arith.constant dense<0.000000e+00> : vector<8x128xf32>
    %66 = tpu.matmul %64, %65, %cst_48 {dimension_numbers = #tpu.dot_dimension_numbers<[1], [0], [0], [1], [0, 0, 1, 1], [], []>} : vector<8x128xbf16>, vector<128x128xbf16>, vector<8x128xf32> -> vector<8x128xf32>
    %c0_49 = arith.constant 0 : index
    %c0_50 = arith.constant 0 : index
    %67 = vector.load %arg17[%c0_49, %c0_50] : memref<1x128xf32, #tpu.memory_space<vmem>>, vector<1x128xf32>
    %68 = vector.broadcast %67 : vector<1x128xf32> to vector<8x128xf32>
    %69 = arith.addf %66, %68 : vector<8x128xf32>
    %70 = arith.negf %69 : vector<8x128xf32>
    %71 = math.exp %70 : vector<8x128xf32>
    %cst_51 = arith.constant 1.000000e+00 : f32
    %72 = vector.broadcast %cst_51 : f32 to vector<8x128xf32>
    %73 = arith.addf %72, %71 : vector<8x128xf32>
    %74 = arith.divf %72, %73 : vector<8x128xf32>
    %c0_52 = arith.constant 0 : index
    %c0_53 = arith.constant 0 : index
    %75 = vector.load %arg18[%c0_52, %c0_53] : memref<8x128xf32, #tpu.memory_space<vmem>>, vector<8x128xf32>
    tpu.vector_store %arg18[%c0_52, %c0_53], %74 {strides = array<i32>} : memref<8x128xf32, #tpu.memory_space<vmem>>, vector<8x128xf32>,
    return
  }
}

</mosaic_0001>

<llo_original>
// kernel: fwd.1
$region0: #{fwd.1}
  #allocation0 [shape = 'u32[]', space=smem, size = 0x4, offset = 0x4, fixed_abs, tag = 'smem constant byte address 0x4 - core index']
  #allocation1 [shape = 'u32[144,128]{1,0:T(1,128)}', space=vmem, size = 0x12000, scoped, tag = 'internal scratch']
  %s0 = inlined_call_operand.vmem [shape: f32[8,128], index: 0, kind: input, shape index: {}]
  %s1 = inlined_call_operand.vmem [shape: f32[8,64], index: 1, kind: input, shape index: {}]
  %s2 = inlined_call_operand.hbm [shape: bf16[128,128], index: 2, kind: input, shape index: {}]
  %s3 = inlined_call_operand.vmem [shape: f32[1,128], index: 3, kind: input, shape index: {}]
  %s4 = inlined_call_operand.hbm [shape: bf16[128,128], index: 4, kind: input, shape index: {}]
  %s5 = inlined_call_operand.vmem [shape: f32[1,128], index: 5, kind: input, shape index: {}]
  %s6 = inlined_call_operand.hbm [shape: bf16[128,128], index: 6, kind: input, shape index: {}]
  %s7 = inlined_call_operand.vmem [shape: f32[1,128], index: 7, kind: input, shape index: {}]
  %s8 = inlined_call_operand.hbm [shape: bf16[128,128], index: 8, kind: input, shape index: {}]
  %s9 = inlined_call_operand.hbm [shape: f32[1,128], index: 9, kind: input, shape index: {}]
  %s10 = inlined_call_operand.hbm [shape: bf16[64,128], index: 10, kind: input, shape index: {}]
  %s11 = inlined_call_operand.hbm [shape: f32[1,128], index: 11, kind: input, shape index: {}]
  %s12 = inlined_call_operand.vmem [shape: bf16[128,128], index: 12, kind: input, shape index: {}]
  %s13 = inlined_call_operand.hbm [shape: f32[1,128], index: 13, kind: input, shape index: {}]
  %s14 = inlined_call_operand.hbm [shape: bf16[128,128], index: 14, kind: input, shape index: {}]
  %s15 = inlined_call_operand.hbm [shape: f32[1,128], index: 15, kind: input, shape index: {}]
  %s16 = inlined_call_operand.hbm [shape: bf16[128,128], index: 16, kind: input, shape index: {}]
  %s17 = inlined_call_operand.vmem [shape: f32[1,128], index: 17, kind: input, shape index: {}]
  %s18 = inlined_call_operand.hbm [shape: f32[8,128], index: 18, kind: output, shape index: {0}]
  %s19 = inlined_call_operand.vmem [shape: f32[8,128], index: 19, kind: output, shape index: {1}]
  %20 = xla_tuple %s18, %s19
  %s21 = sld [smem:[#allocation0]]
  $region134: #{fwd.1} parent=0
    _
  %s23 = ssub.s32 1, %s21
  %s24 = scalar_select 0, %s23, %s21
  $region1: #{fwd.1} parent=0
    #allocation2 [shape = 'u8[32768]{0}', space=vmem, size = 0x8000, scoped, tag = 'input window, operand 2, single buffered']
    #allocation3 [shape = 's32[1]{0}', space=sflag, size = 0x4, scoped, tag = 'scoped memory for fwd.1']
    #allocation4 [shape = 's32[1]{0}', space=sflag, size = 0x4, scoped, tag = 'scoped memory for fwd.1']
    #allocation5 [shape = 'u8[32768]{0}', space=vmem, size = 0x8000, scoped, tag = 'input window, operand 4, single buffered']
    #allocation6 [shape = 's32[1]{0}', space=sflag, size = 0x4, scoped, tag = 'scoped memory for fwd.1']
    #allocation7 [shape = 'u8[32768]{0}', space=vmem, size = 0x8000, scoped, tag = 'input window, operand 6, single buffered']
    #allocation8 [shape = 'u8[32768]{0}', space=vmem, size = 0x8000, scoped, tag = 'input window, operand 8, single buffered']
    #allocation9 [shape = 's32[1]{0}', space=sflag, size = 0x4, scoped, tag = 'scoped memory for fwd.1']
    #allocation10 [shape = 'u8[512]{0}', space=vmem, size = 0x400, scoped, tag = 'input window, operand 9, single buffered']
    #allocation11 [shape = 'u8[16384]{0}', space=vmem, size = 0x4000, scoped, tag = 'input window, operand 10, single buffered']
    #allocation12 [shape = 's32[1]{0}', space=sflag, size = 0x4, scoped, tag = 'scoped memory for fwd.1']
    #allocation13 [shape = 'u8[512]{0}', space=vmem, size = 0x400, scoped, tag = 'input window, operand 11, single buffered']
    #allocation14 [shape = 'u8[512]{0}', space=vmem, size = 0x400, scoped, tag = 'input window, operand 13, single buffered']
    #allocation15 [shape = 's32[1]{0}', space=sflag, size = 0x4, scoped, tag = 'scoped memory for fwd.1']
    #allocation16 [shape = 'u8[32768]{0}', space=vmem, size = 0x8000, scoped, tag = 'input window, operand 14, single buffered']
    #allocation17 [shape = 'u8[512]{0}', space=vmem, size = 0x400, scoped, tag = 'input window, operand 15, single buffered']
    #allocation18 [shape = 's32[1]{0}', space=sflag, size = 0x4, scoped, tag = 'scoped memory for fwd.1']
    #allocation19 [shape = 'u8[32768]{0}', space=vmem, size = 0x8000, scoped, tag = 'input window, operand 16, single buffered']
    #allocation20 [shape = 'u8[4096]{0}', space=vmem, size = 0x1000, scoped, tag = 'output window, operand 0, single buffered']
    %25 = vsyncpa [#allocation3], 0
    %26 = vsyncpa [#allocation6], 0
    %27 = vsyncpa [#allocation9], 0
    %28 = vsyncpa [#allocation12], 0
    %29 = vsyncpa [#allocation15], 0
    %30 = vsyncpa [#allocation18], 0
    %31 = vsyncpa [#allocation4], 0
    // Predicated region
    $region2: #{fwd.1} parent=1 // pred_check
      _
    $region3: #{fwd.1} parent=1 // pred_check_branch
      %33 = sbr.rel (0) target = $region5
    $region4: #{fwd.1} parent=1 // pred_region
      _
    $region5: #{fwd.1} parent=1 // pred_fallthru
      _
    // Predicated region
    $region6: #{fwd.1} parent=1 // pred_check
      _
    $region7: #{fwd.1} parent=1 // pred_check_branch
      %35 = sbr.rel (0) target = $region9
    $region8: #{fwd.1} parent=1 // pred_region
      _
    $region9: #{fwd.1} parent=1 // pred_fallthru
      _
    // Predicated region
    $region10: #{fwd.1} parent=1 // pred_check
      _
    $region11: #{fwd.1} parent=1 // pred_check_branch
      %37 = sbr.rel (0) target = $region13
    $region12: #{fwd.1} parent=1 // pred_region
      %s39 = ssub.s32 1024, 1024
      %40 = vsyncadd [#allocation3], %s39
      %s41 = sshll.u32 [#allocation2], 4
      %s42 = int_to_ptr.vmem [resolvable:$true] %s41
      %47 = dma.hbm_to_vmem [thread:$0]  %s2, 1024, %s42, [#allocation3], 64, 64, 4
    $region13: #{fwd.1} parent=1 // pred_fallthru
      _
    // Predicated region
    $region14: #{fwd.1} parent=1 // pred_check
      _
    $region15: #{fwd.1} parent=1 // pred_check_branch
      %49 = sbr.rel (0) target = $region17
    $region16: #{fwd.1} parent=1 // pred_region
      _
    $region17: #{fwd.1} parent=1 // pred_fallthru
      _
    // Predicated region
    $region18: #{fwd.1} parent=1 // pred_check
      _
    $region19: #{fwd.1} parent=1 // pred_check_branch
      %51 = sbr.rel (0) target = $region21
    $region20: #{fwd.1} parent=1 // pred_region
      %s53 = ssub.s32 1024, 1024
      %54 = vsyncadd [#allocation6], %s53
      %s55 = sshll.u32 [#allocation5], 4
      %s56 = int_to_ptr.vmem [resolvable:$true] %s55
      %61 = dma.hbm_to_vmem [thread:$0]  %s4, 1024, %s56, [#allocation6], 64, 64, 4
    $region21: #{fwd.1} parent=1 // pred_fallthru
      _
    // Predicated region
    $region22: #{fwd.1} parent=1 // pred_check
      _
    $region23: #{fwd.1} parent=1 // pred_check_branch
      %63 = sbr.rel (0) target = $region25
    $region24: #{fwd.1} parent=1 // pred_region
      _
    $region25: #{fwd.1} parent=1 // pred_fallthru
      _
    // Predicated region
    $region26: #{fwd.1} parent=1 // pred_check
      _
    $region27: #{fwd.1} parent=1 // pred_check_branch
      %65 = sbr.rel (0) target = $region29
    $region28: #{fwd.1} parent=1 // pred_region
      %s67 = ssub.s32 1024, 1024
      %68 = vsyncadd [#allocation6], %s67
      %s69 = sshll.u32 [#allocation7], 4
      %s70 = int_to_ptr.vmem [resolvable:$true] %s69
      %75 = dma.hbm_to_vmem [thread:$0]  %s6, 1024, %s70, [#allocation6], 64, 64, 4
    $region29: #{fwd.1} parent=1 // pred_fallthru
      _
    // Predicated region
    $region30: #{fwd.1} parent=1 // pred_check
      _
    $region31: #{fwd.1} parent=1 // pred_check_branch
      %77 = sbr.rel (0) target = $region33
    $region32: #{fwd.1} parent=1 // pred_region
      _
    $region33: #{fwd.1} parent=1 // pred_fallthru
      _
    // Predicated region
    $region34: #{fwd.1} parent=1 // pred_check
      _
    $region35: #{fwd.1} parent=1 // pred_check_branch
      %79 = sbr.rel (0) target = $region37
    $region36: #{fwd.1} parent=1 // pred_region
      %s81 = ssub.s32 1024, 1024
      %82 = vsyncadd [#allocation9], %s81
      %s83 = sshll.u32 [#allocation8], 4
      %s84 = int_to_ptr.vmem [resolvable:$true] %s83
      %89 = dma.hbm_to_vmem [thread:$0]  %s8, 1024, %s84, [#allocation9], 64, 64, 4
    $region37: #{fwd.1} parent=1 // pred_fallthru
      _
    // Predicated region
    $region38: #{fwd.1} parent=1 // pred_check
      _
    $region39: #{fwd.1} parent=1 // pred_check_branch
      %91 = sbr.rel (0) target = $region41
    $region40: #{fwd.1} parent=1 // pred_region
      %s93 = ssub.s32 16, 16
      %94 = vsyncadd [#allocation9], %s93
      %s96 = sshll.u32 [#allocation10], 4
      %s97 = int_to_ptr.vmem [resolvable:$true] %s96
      %99 = dma.hbm_to_vmem [thread:$0]  %s9, 16, %s97, [#allocation9]
    $region41: #{fwd.1} parent=1 // pred_fallthru
      _
    // Predicated region
    $region42: #{fwd.1} parent=1 // pred_check
      _
    $region43: #{fwd.1} parent=1 // pred_check_branch
      %101 = sbr.rel (0) target = $region45
    $region44: #{fwd.1} parent=1 // pred_region
      %s103 = ssub.s32 512, 512
      %104 = vsyncadd [#allocation12], %s103
      %s105 = sshll.u32 [#allocation11], 4
      %s106 = int_to_ptr.vmem [resolvable:$true] %s105
      %111 = dma.hbm_to_vmem [thread:$0]  %s10, 512, %s106, [#allocation12], 64, 64, 4
    $region45: #{fwd.1} parent=1 // pred_fallthru
      _
    // Predicated region
    $region46: #{fwd.1} parent=1 // pred_check
      _
    $region47: #{fwd.1} parent=1 // pred_check_branch
      %113 = sbr.rel (0) target = $region49
    $region48: #{fwd.1} parent=1 // pred_region
      %s115 = ssub.s32 16, 16
      %116 = vsyncadd [#allocation12], %s115
      %s118 = sshll.u32 [#allocation13], 4
      %s119 = int_to_ptr.vmem [resolvable:$true] %s118
      %121 = dma.hbm_to_vmem [thread:$0]  %s11, 16, %s119, [#allocation12]
    $region49: #{fwd.1} parent=1 // pred_fallthru
      _
    // Predicated region
    $region50: #{fwd.1} parent=1 // pred_check
      _
    $region51: #{fwd.1} parent=1 // pred_check_branch
      %123 = sbr.rel (0) target = $region53
    $region52: #{fwd.1} parent=1 // pred_region
      _
    $region53: #{fwd.1} parent=1 // pred_fallthru
      _
    // Predicated region
    $region54: #{fwd.1} parent=1 // pred_check
      _
    $region55: #{fwd.1} parent=1 // pred_check_branch
      %125 = sbr.rel (0) target = $region57
    $region56: #{fwd.1} parent=1 // pred_region
      %s127 = ssub.s32 16, 16
      %128 = vsyncadd [#allocation15], %s127
      %s130 = sshll.u32 [#allocation14], 4
      %s131 = int_to_ptr.vmem [resolvable:$true] %s130
      %133 = dma.hbm_to_vmem [thread:$0]  %s13, 16, %s131, [#allocation15]
    $region57: #{fwd.1} parent=1 // pred_fallthru
      _
    // Predicated region
    $region58: #{fwd.1} parent=1 // pred_check
      _
    $region59: #{fwd.1} parent=1 // pred_check_branch
      %135 = sbr.rel (0) target = $region61
    $region60: #{fwd.1} parent=1 // pred_region
      %s137 = ssub.s32 1024, 1024
      %138 = vsyncadd [#allocation15], %s137
      %s139 = sshll.u32 [#allocation16], 4
      %s140 = int_to_ptr.vmem [resolvable:$true] %s139
      %145 = dma.hbm_to_vmem [thread:$0]  %s14, 1024, %s140, [#allocation15], 64, 64, 4
    $region61: #{fwd.1} parent=1 // pred_fallthru
      _
    // Predicated region
    $region62: #{fwd.1} parent=1 // pred_check
      _
    $region63: #{fwd.1} parent=1 // pred_check_branch
      %147 = sbr.rel (0) target = $region65
    $region64: #{fwd.1} parent=1 // pred_region
      %s149 = ssub.s32 16, 16
      %150 = vsyncadd [#allocation18], %s149
      %s152 = sshll.u32 [#allocation17], 4
      %s153 = int_to_ptr.vmem [resolvable:$true] %s152
      %155 = dma.hbm_to_vmem [thread:$0]  %s15, 16, %s153, [#allocation18]
    $region65: #{fwd.1} parent=1 // pred_fallthru
      _
    // Predicated region
    $region66: #{fwd.1} parent=1 // pred_check
      _
    $region67: #{fwd.1} parent=1 // pred_check_branch
      %157 = sbr.rel (0) target = $region69
    $region68: #{fwd.1} parent=1 // pred_region
      %s159 = ssub.s32 1024, 1024
      %160 = vsyncadd [#allocation18], %s159
      %s161 = sshll.u32 [#allocation19], 4
      %s162 = int_to_ptr.vmem [resolvable:$true] %s161
      %167 = dma.hbm_to_vmem [thread:$0]  %s16, 1024, %s162, [#allocation18], 64, 64, 4
    $region69: #{fwd.1} parent=1 // pred_fallthru
      _
    // Predicated region
    $region70: #{fwd.1} parent=1 // pred_check
      _
    $region71: #{fwd.1} parent=1 // pred_check_branch
      %169 = sbr.rel (0) target = $region73
    $region72: #{fwd.1} parent=1 // pred_region
      _
    $region73: #{fwd.1} parent=1 // pred_fallthru
      _
    // Predicated region
    $region74: #{fwd.1} parent=1 // pred_check
      _
    $region75: #{fwd.1} parent=1 // pred_check_branch
      %171 = sbr.rel (0) target = $region77
    $region76: #{fwd.1} parent=1 // pred_region
      %172 = dma.done [#allocation3], 1024
    $region77: #{fwd.1} parent=1 // pred_fallthru
      _
    // Predicated region
    $region78: #{fwd.1} parent=1 // pred_check
      _
    $region79: #{fwd.1} parent=1 // pred_check_branch
      %174 = sbr.rel (0) target = $region81
    $region80: #{fwd.1} parent=1 // pred_region
      %175 = dma.done [#allocation6], 1024
    $region81: #{fwd.1} parent=1 // pred_fallthru
      _
    // Predicated region
    $region82: #{fwd.1} parent=1 // pred_check
      _
    $region83: #{fwd.1} parent=1 // pred_check_branch
      %177 = sbr.rel (0) target = $region85
    $region84: #{fwd.1} parent=1 // pred_region
      %178 = dma.done [#allocation6], 1024
    $region85: #{fwd.1} parent=1 // pred_fallthru
      _
    // Predicated region
    $region86: #{fwd.1} parent=1 // pred_check
      _
    $region87: #{fwd.1} parent=1 // pred_check_branch
      %180 = sbr.rel (0) target = $region89
    $region88: #{fwd.1} parent=1 // pred_region
      %181 = dma.done [#allocation9], 1024
    $region89: #{fwd.1} parent=1 // pred_fallthru
      _
    // Predicated region
    $region90: #{fwd.1} parent=1 // pred_check
      _
    $region91: #{fwd.1} parent=1 // pred_check_branch
      %183 = sbr.rel (0) target = $region93
    $region92: #{fwd.1} parent=1 // pred_region
      %184 = dma.done [#allocation9], 16
    $region93: #{fwd.1} parent=1 // pred_fallthru
      _
    // Predicated region
    $region94: #{fwd.1} parent=1 // pred_check
      _
    $region95: #{fwd.1} parent=1 // pred_check_branch
      %186 = sbr.rel (0) target = $region97
    $region96: #{fwd.1} parent=1 // pred_region
      %187 = dma.done [#allocation12], 512
    $region97: #{fwd.1} parent=1 // pred_fallthru
      _
    // Predicated region
    $region98: #{fwd.1} parent=1 // pred_check
      _
    $region99: #{fwd.1} parent=1 // pred_check_branch
      %189 = sbr.rel (0) target = $region101
    $region100: #{fwd.1} parent=1 // pred_region
      %190 = dma.done [#allocation12], 16
    $region101: #{fwd.1} parent=1 // pred_fallthru
      _
    // Predicated region
    $region102: #{fwd.1} parent=1 // pred_check
      _
    $region103: #{fwd.1} parent=1 // pred_check_branch
      %192 = sbr.rel (0) target = $region105
    $region104: #{fwd.1} parent=1 // pred_region
      %193 = dma.done [#allocation15], 16
    $region105: #{fwd.1} parent=1 // pred_fallthru
      _
    // Predicated region
    $region106: #{fwd.1} parent=1 // pred_check
      _
    $region107: #{fwd.1} parent=1 // pred_check_branch
      %195 = sbr.rel (0) target = $region109
    $region108: #{fwd.1} parent=1 // pred_region
      %196 = dma.done [#allocation15], 1024
    $region109: #{fwd.1} parent=1 // pred_fallthru
      _
    // Predicated region
    $region110: #{fwd.1} parent=1 // pred_check
      _
    $region111: #{fwd.1} parent=1 // pred_check_branch
      %198 = sbr.rel (0) target = $region113
    $region112: #{fwd.1} parent=1 // pred_region
      %199 = dma.done [#allocation18], 16
    $region113: #{fwd.1} parent=1 // pred_fallthru
      _
    // Predicated region
    $region114: #{fwd.1} parent=1 // pred_check
      _
    $region115: #{fwd.1} parent=1 // pred_check_branch
      %201 = sbr.rel (0) target = $region117
    $region116: #{fwd.1} parent=1 // pred_region
      %202 = dma.done [#allocation18], 1024
    $region117: #{fwd.1} parent=1 // pred_fallthru
      _
    %v204 = vld [vmem:[%s0] sm:$0xff]
    %v205 = vpack.c.bf16 %v204, %v204
    %v206 = vld [vmem:[#allocation2] sm:$0xf]
    %v207 = vld [vmem:[#allocation2 + $0x4] sm:$0xf]
    %v208 = vld [vmem:[#allocation2 + $0x8] sm:$0xf]
    %v209 = vld [vmem:[#allocation2 + $0xc] sm:$0xf]
    %v210 = vld [vmem:[#allocation2 + $0x10] sm:$0xf]
    %v211 = vld [vmem:[#allocation2 + $0x14] sm:$0xf]
    %v212 = vld [vmem:[#allocation2 + $0x18] sm:$0xf]
    %v213 = vld [vmem:[#allocation2 + $0x1c] sm:$0xf]
    %v214 = vld [vmem:[#allocation2 + $0x20] sm:$0xf]
    %v215 = vld [vmem:[#allocation2 + $0x24] sm:$0xf]
    %v216 = vld [vmem:[#allocation2 + $0x28] sm:$0xf]
    %v217 = vld [vmem:[#allocation2 + $0x2c] sm:$0xf]
    %v218 = vld [vmem:[#allocation2 + $0x30] sm:$0xf]
    %v219 = vld [vmem:[#allocation2 + $0x34] sm:$0xf]
    %v220 = vld [vmem:[#allocation2 + $0x38] sm:$0xf]
    %v221 = vld [vmem:[#allocation2 + $0x3c] sm:$0xf]
    %v222 = vld [vmem:[%s3] sm:$0x1]
    %v224 = vlaneseq
    %v225 = vshrl.u32 %v224, 7
    %v226 = vsub.s32 0, %v225
    %v227 = vrot.slane %v222, %v226
    %v245 = vunpack.c.l.b16 %v206
    %v246 = vunpack.c.l.b16 %v207
    %v247 = vunpack.c.l.b16 %v208
    %v248 = vunpack.c.l.b16 %v209
    %v249 = vunpack.c.l.b16 %v210
    %v250 = vunpack.c.l.b16 %v211
    %v251 = vunpack.c.l.b16 %v212
    %v252 = vunpack.c.l.b16 %v213
    %v253 = vunpack.c.l.b16 %v214
    %v254 = vunpack.c.l.b16 %v215
    %v255 = vunpack.c.l.b16 %v216
    %v256 = vunpack.c.l.b16 %v217
    %v257 = vunpack.c.l.b16 %v218
    %v258 = vunpack.c.l.b16 %v219
    %v259 = vunpack.c.l.b16 %v220
    %v260 = vunpack.c.l.b16 %v221
    %v261 = vpack.c.b16 %v246, %v245
    %v262 = vpack.c.b16 %v248, %v247
    %v263 = vpack.c.b16 %v250, %v249
    %v264 = vpack.c.b16 %v252, %v251
    %v265 = vpack.c.b16 %v254, %v253
    %v266 = vpack.c.b16 %v256, %v255
    %v267 = vpack.c.b16 %v258, %v257
    %v268 = vpack.c.b16 %v260, %v259
    %277 = vmatprep.subr.bf16.mxu0 0
    %278 = vmatpush1.bf16.msra.mxu0 %v261
    %279 = vmatprep.subr.bf16.mxu0 0
    %280 = vmatpush1.bf16.msra.mxu0 %v262
    %281 = vmatprep.subr.bf16.mxu0 0
    %282 = vmatpush1.bf16.msra.mxu0 %v263
    %283 = vmatprep.subr.bf16.mxu0 0
    %284 = vmatpush1.bf16.msra.mxu0 %v264
    %285 = vmatprep.subr.bf16.mxu0 0
    %286 = vmatpush1.bf16.msra.mxu0 %v265
    %287 = vmatprep.subr.bf16.mxu0 0
    %288 = vmatpush1.bf16.msra.mxu0 %v266
    %289 = vmatprep.subr.bf16.mxu0 0
    %290 = vmatpush1.bf16.msra.mxu0 %v267
    %291 = vmatprep.subr.bf16.mxu0 0
    %292 = vmatpush1.bf16.msra.mxu0 %v268
    %293 = vmatprep.subr.bf16.mxu0 0
    %294 = vmatpush1.bf16.msra.mxu0 0
    %295 = vmatprep.subr.bf16.mxu0 0
    %296 = vmatpush1.bf16.msra.mxu0 0
    %297 = vmatprep.subr.bf16.mxu0 0
    %298 = vmatpush1.bf16.msra.mxu0 0
    %299 = vmatprep.subr.bf16.mxu0 0
    %300 = vmatpush1.bf16.msra.mxu0 0
    %301 = vmatprep.subr.bf16.mxu0 0
    %302 = vmatpush1.bf16.msra.mxu0 0
    %303 = vmatprep.subr.bf16.mxu0 0
    %304 = vmatpush1.bf16.msra.mxu0 0
    %305 = vmatprep.subr.bf16.mxu0 0
    %306 = vmatpush1.bf16.msra.mxu0 0
    %307 = vmatprep.subr.bf16.mxu0 0
    %308 = vmatpush1.bf16.msra.mxu0 0
    %309 = vmatprep.mubr.bf16.mxu0 0
    %310 = vmatmul.mubr.bf16.gmra.mrb[0].mxu0 %v205
    %v311 = vpop.f32.mrb[0].mxu0
    %v312 = vadd.f32 %v227, %v311
    %v313 = vpop.f32.mrb[0].mxu0
    %v314 = vpop.f32.mrb[0].mxu0
    %v315 = vpop.f32.mrb[0].mxu0
    %316 = vdwg.mxu0
    %v317 = vmax.f32 %v312, 0.0
    %v318 = vpack.c.bf16 %v317, %v317
    %v319 = vld [vmem:[#allocation5] sm:$0xf]
    %v320 = vld [vmem:[#allocation5 + $0x4] sm:$0xf]
    %v321 = vld [vmem:[#allocation5 + $0x8] sm:$0xf]
    %v322 = vld [vmem:[#allocation5 + $0xc] sm:$0xf]
    %v323 = vld [vmem:[#allocation5 + $0x10] sm:$0xf]
    %v324 = vld [vmem:[#allocation5 + $0x14] sm:$0xf]
    %v325 = vld [vmem:[#allocation5 + $0x18] sm:$0xf]
    %v326 = vld [vmem:[#allocation5 + $0x1c] sm:$0xf]
    %v327 = vld [vmem:[#allocation5 + $0x20] sm:$0xf]
    %v328 = vld [vmem:[#allocation5 + $0x24] sm:$0xf]
    %v329 = vld [vmem:[#allocation5 + $0x28] sm:$0xf]
    %v330 = vld [vmem:[#allocation5 + $0x2c] sm:$0xf]
    %v331 = vld [vmem:[#allocation5 + $0x30] sm:$0xf]
    %v332 = vld [vmem:[#allocation5 + $0x34] sm:$0xf]
    %v333 = vld [vmem:[#allocation5 + $0x38] sm:$0xf]
    %v334 = vld [vmem:[#allocation5 + $0x3c] sm:$0xf]
    %v335 = vld [vmem:[%s5] sm:$0x1]
    %v337 = vlaneseq
    %v338 = vshrl.u32 %v337, 7
    %v339 = vsub.s32 0, %v338
    %v340 = vrot.slane %v335, %v339
    %v358 = vunpack.c.l.b16 %v319
    %v359 = vunpack.c.l.b16 %v320
    %v360 = vunpack.c.l.b16 %v321
    %v361 = vunpack.c.l.b16 %v322
    %v362 = vunpack.c.l.b16 %v323
    %v363 = vunpack.c.l.b16 %v324
    %v364 = vunpack.c.l.b16 %v325
    %v365 = vunpack.c.l.b16 %v326
    %v366 = vunpack.c.l.b16 %v327
    %v367 = vunpack.c.l.b16 %v328
    %v368 = vunpack.c.l.b16 %v329
    %v369 = vunpack.c.l.b16 %v330
    %v370 = vunpack.c.l.b16 %v331
    %v371 = vunpack.c.l.b16 %v332
    %v372 = vunpack.c.l.b16 %v333
    %v373 = vunpack.c.l.b16 %v334
    %v374 = vpack.c.b16 %v359, %v358
    %v375 = vpack.c.b16 %v361, %v360
    %v376 = vpack.c.b16 %v363, %v362
    %v377 = vpack.c.b16 %v365, %v364
    %v378 = vpack.c.b16 %v367, %v366
    %v379 = vpack.c.b16 %v369, %v368
    %v380 = vpack.c.b16 %v371, %v370
    %v381 = vpack.c.b16 %v373, %v372
    %390 = vmatprep.subr.bf16.mxu0 0
    %391 = vmatpush1.bf16.msra.mxu0 %v374
    %392 = vmatprep.subr.bf16.mxu0 0
    %393 = vmatpush1.bf16.msra.mxu0 %v375
    %394 = vmatprep.subr.bf16.mxu0 0
    %395 = vmatpush1.bf16.msra.mxu0 %v376
    %396 = vmatprep.subr.bf16.mxu0 0
    %397 = vmatpush1.bf16.msra.mxu0 %v377
    %398 = vmatprep.subr.bf16.mxu0 0
    %399 = vmatpush1.bf16.msra.mxu0 %v378
    %400 = vmatprep.subr.bf16.mxu0 0
    %401 = vmatpush1.bf16.msra.mxu0 %v379
    %402 = vmatprep.subr.bf16.mxu0 0
    %403 = vmatpush1.bf16.msra.mxu0 %v380
    %404 = vmatprep.subr.bf16.mxu0 0
    %405 = vmatpush1.bf16.msra.mxu0 %v381
    %406 = vmatprep.subr.bf16.mxu0 0
    %407 = vmatpush1.bf16.msra.mxu0 0
    %408 = vmatprep.subr.bf16.mxu0 0
    %409 = vmatpush1.bf16.msra.mxu0 0
    %410 = vmatprep.subr.bf16.mxu0 0
    %411 = vmatpush1.bf16.msra.mxu0 0
    %412 = vmatprep.subr.bf16.mxu0 0
    %413 = vmatpush1.bf16.msra.mxu0 0
    %414 = vmatprep.subr.bf16.mxu0 0
    %415 = vmatpush1.bf16.msra.mxu0 0
    %416 = vmatprep.subr.bf16.mxu0 0
    %417 = vmatpush1.bf16.msra.mxu0 0
    %418 = vmatprep.subr.bf16.mxu0 0
    %419 = vmatpush1.bf16.msra.mxu0 0
    %420 = vmatprep.subr.bf16.mxu0 0
    %421 = vmatpush1.bf16.msra.mxu0 0
    %422 = vmatprep.mubr.bf16.mxu0 0
    %423 = vmatmul.mubr.bf16.gmra.mrb[0].mxu0 %v318
    %v424 = vpop.f32.mrb[0].mxu0
    %v425 = vadd.f32 %v340, %v424
    %v426 = vpop.f32.mrb[0].mxu0
    %v427 = vpop.f32.mrb[0].mxu0
    %v428 = vpop.f32.mrb[0].mxu0
    %429 = vdwg.mxu0
    %v430 = vmax.f32 %v425, 0.0
    %v431 = vpack.c.bf16 %v430, %v430
    %v432 = vld [vmem:[#allocation7] sm:$0xf]
    %v433 = vld [vmem:[#allocation7 + $0x4] sm:$0xf]
    %v434 = vld [vmem:[#allocation7 + $0x8] sm:$0xf]
    %v435 = vld [vmem:[#allocation7 + $0xc] sm:$0xf]
    %v436 = vld [vmem:[#allocation7 + $0x10] sm:$0xf]
    %v437 = vld [vmem:[#allocation7 + $0x14] sm:$0xf]
    %v438 = vld [vmem:[#allocation7 + $0x18] sm:$0xf]
    %v439 = vld [vmem:[#allocation7 + $0x1c] sm:$0xf]
    %v440 = vld [vmem:[#allocation7 + $0x20] sm:$0xf]
    %v441 = vld [vmem:[#allocation7 + $0x24] sm:$0xf]
    %v442 = vld [vmem:[#allocation7 + $0x28] sm:$0xf]
    %v443 = vld [vmem:[#allocation7 + $0x2c] sm:$0xf]
    %v444 = vld [vmem:[#allocation7 + $0x30] sm:$0xf]
    %v445 = vld [vmem:[#allocation7 + $0x34] sm:$0xf]
    %v446 = vld [vmem:[#allocation7 + $0x38] sm:$0xf]
    %v447 = vld [vmem:[#allocation7 + $0x3c] sm:$0xf]
    %v448 = vld [vmem:[%s7] sm:$0x1]
    %v450 = vlaneseq
    %v451 = vshrl.u32 %v450, 7
    %v452 = vsub.s32 0, %v451
    %v453 = vrot.slane %v448, %v452
    %v471 = vunpack.c.l.b16 %v432
    %v472 = vunpack.c.l.b16 %v433
    %v473 = vunpack.c.l.b16 %v434
    %v474 = vunpack.c.l.b16 %v435
    %v475 = vunpack.c.l.b16 %v436
    %v476 = vunpack.c.l.b16 %v437
    %v477 = vunpack.c.l.b16 %v438
    %v478 = vunpack.c.l.b16 %v439
    %v479 = vunpack.c.l.b16 %v440
    %v480 = vunpack.c.l.b16 %v441
    %v481 = vunpack.c.l.b16 %v442
    %v482 = vunpack.c.l.b16 %v443
    %v483 = vunpack.c.l.b16 %v444
    %v484 = vunpack.c.l.b16 %v445
    %v485 = vunpack.c.l.b16 %v446
    %v486 = vunpack.c.l.b16 %v447
    %v487 = vpack.c.b16 %v472, %v471
    %v488 = vpack.c.b16 %v474, %v473
    %v489 = vpack.c.b16 %v476, %v475
    %v490 = vpack.c.b16 %v478, %v477
    %v491 = vpack.c.b16 %v480, %v479
    %v492 = vpack.c.b16 %v482, %v481
    %v493 = vpack.c.b16 %v484, %v483
    %v494 = vpack.c.b16 %v486, %v485
    %503 = vmatprep.subr.bf16.mxu0 0
    %504 = vmatpush1.bf16.msra.mxu0 %v487
    %505 = vmatprep.subr.bf16.mxu0 0
    %506 = vmatpush1.bf16.msra.mxu0 %v488
    %507 = vmatprep.subr.bf16.mxu0 0
    %508 = vmatpush1.bf16.msra.mxu0 %v489
    %509 = vmatprep.subr.bf16.mxu0 0
    %510 = vmatpush1.bf16.msra.mxu0 %v490
    %511 = vmatprep.subr.bf16.mxu0 0
    %512 = vmatpush1.bf16.msra.mxu0 %v491
    %513 = vmatprep.subr.bf16.mxu0 0
    %514 = vmatpush1.bf16.msra.mxu0 %v492
    %515 = vmatprep.subr.bf16.mxu0 0
    %516 = vmatpush1.bf16.msra.mxu0 %v493
    %517 = vmatprep.subr.bf16.mxu0 0
    %518 = vmatpush1.bf16.msra.mxu0 %v494
    %519 = vmatprep.subr.bf16.mxu0 0
    %520 = vmatpush1.bf16.msra.mxu0 0
    %521 = vmatprep.subr.bf16.mxu0 0
    %522 = vmatpush1.bf16.msra.mxu0 0
    %523 = vmatprep.subr.bf16.mxu0 0
    %524 = vmatpush1.bf16.msra.mxu0 0
    %525 = vmatprep.subr.bf16.mxu0 0
    %526 = vmatpush1.bf16.msra.mxu0 0
    %527 = vmatprep.subr.bf16.mxu0 0
    %528 = vmatpush1.bf16.msra.mxu0 0
    %529 = vmatprep.subr.bf16.mxu0 0
    %530 = vmatpush1.bf16.msra.mxu0 0
    %531 = vmatprep.subr.bf16.mxu0 0
    %532 = vmatpush1.bf16.msra.mxu0 0
    %533 = vmatprep.subr.bf16.mxu0 0
    %534 = vmatpush1.bf16.msra.mxu0 0
    %535 = vmatprep.mubr.bf16.mxu0 0
    %536 = vmatmul.mubr.bf16.gmra.mrb[0].mxu0 %v431
    %v537 = vpop.f32.mrb[0].mxu0
    %v538 = vadd.f32 %v453, %v537
    %v539 = vpop.f32.mrb[0].mxu0
    %v540 = vpop.f32.mrb[0].mxu0
    %v541 = vpop.f32.mrb[0].mxu0
    %542 = vdwg.mxu0
    %v543 = vmax.f32 %v538, 0.0
    %v544 = vpack.c.bf16 %v543, %v543
    %v545 = vld [vmem:[#allocation8] sm:$0xf]
    %v546 = vld [vmem:[#allocation8 + $0x4] sm:$0xf]
    %v547 = vld [vmem:[#allocation8 + $0x8] sm:$0xf]
    %v548 = vld [vmem:[#allocation8 + $0xc] sm:$0xf]
    %v549 = vld [vmem:[#allocation8 + $0x10] sm:$0xf]
    %v550 = vld [vmem:[#allocation8 + $0x14] sm:$0xf]
    %v551 = vld [vmem:[#allocation8 + $0x18] sm:$0xf]
    %v552 = vld [vmem:[#allocation8 + $0x1c] sm:$0xf]
    %v553 = vld [vmem:[#allocation8 + $0x20] sm:$0xf]
    %v554 = vld [vmem:[#allocation8 + $0x24] sm:$0xf]
    %v555 = vld [vmem:[#allocation8 + $0x28] sm:$0xf]
    %v556 = vld [vmem:[#allocation8 + $0x2c] sm:$0xf]
    %v557 = vld [vmem:[#allocation8 + $0x30] sm:$0xf]
    %v558 = vld [vmem:[#allocation8 + $0x34] sm:$0xf]
    %v559 = vld [vmem:[#allocation8 + $0x38] sm:$0xf]
    %v560 = vld [vmem:[#allocation8 + $0x3c] sm:$0xf]
    %v561 = vld [vmem:[#allocation10] sm:$0x1]
    %v563 = vlaneseq
    %v564 = vshrl.u32 %v563, 7
    %v565 = vsub.s32 0, %v564
    %v566 = vrot.slane %v561, %v565
    %v584 = vunpack.c.l.b16 %v545
    %v585 = vunpack.c.l.b16 %v546
    %v586 = vunpack.c.l.b16 %v547
    %v587 = vunpack.c.l.b16 %v548
    %v588 = vunpack.c.l.b16 %v549
    %v589 = vunpack.c.l.b16 %v550
    %v590 = vunpack.c.l.b16 %v551
    %v591 = vunpack.c.l.b16 %v552
    %v592 = vunpack.c.l.b16 %v553
    %v593 = vunpack.c.l.b16 %v554
    %v594 = vunpack.c.l.b16 %v555
    %v595 = vunpack.c.l.b16 %v556
    %v596 = vunpack.c.l.b16 %v557
    %v597 = vunpack.c.l.b16 %v558
    %v598 = vunpack.c.l.b16 %v559
    %v599 = vunpack.c.l.b16 %v560
    %v600 = vpack.c.b16 %v585, %v584
    %v601 = vpack.c.b16 %v587, %v586
    %v602 = vpack.c.b16 %v589, %v588
    %v603 = vpack.c.b16 %v591, %v590
    %v604 = vpack.c.b16 %v593, %v592
    %v605 = vpack.c.b16 %v595, %v594
    %v606 = vpack.c.b16 %v597, %v596
    %v607 = vpack.c.b16 %v599, %v598
    %616 = vmatprep.subr.bf16.mxu0 0
    %617 = vmatpush1.bf16.msra.mxu0 %v600
    %618 = vmatprep.subr.bf16.mxu0 0
    %619 = vmatpush1.bf16.msra.mxu0 %v601
    %620 = vmatprep.subr.bf16.mxu0 0
    %621 = vmatpush1.bf16.msra.mxu0 %v602
    %622 = vmatprep.subr.bf16.mxu0 0
    %623 = vmatpush1.bf16.msra.mxu0 %v603
    %624 = vmatprep.subr.bf16.mxu0 0
    %625 = vmatpush1.bf16.msra.mxu0 %v604
    %626 = vmatprep.subr.bf16.mxu0 0
    %627 = vmatpush1.bf16.msra.mxu0 %v605
    %628 = vmatprep.subr.bf16.mxu0 0
    %629 = vmatpush1.bf16.msra.mxu0 %v606
    %630 = vmatprep.subr.bf16.mxu0 0
    %631 = vmatpush1.bf16.msra.mxu0 %v607
    %632 = vmatprep.subr.bf16.mxu0 0
    %633 = vmatpush1.bf16.msra.mxu0 0
    %634 = vmatprep.subr.bf16.mxu0 0
    %635 = vmatpush1.bf16.msra.mxu0 0
    %636 = vmatprep.subr.bf16.mxu0 0
    %637 = vmatpush1.bf16.msra.mxu0 0
    %638 = vmatprep.subr.bf16.mxu0 0
    %639 = vmatpush1.bf16.msra.mxu0 0
    %640 = vmatprep.subr.bf16.mxu0 0
    %641 = vmatpush1.bf16.msra.mxu0 0
    %642 = vmatprep.subr.bf16.mxu0 0
    %643 = vmatpush1.bf16.msra.mxu0 0
    %644 = vmatprep.subr.bf16.mxu0 0
    %645 = vmatpush1.bf16.msra.mxu0 0
    %646 = vmatprep.subr.bf16.mxu0 0
    %647 = vmatpush1.bf16.msra.mxu0 0
    %648 = vmatprep.mubr.bf16.mxu0 0
    %649 = vmatmul.mubr.bf16.gmra.mrb[0].mxu0 %v544
    %v650 = vpop.f32.mrb[0].mxu0
    %v651 = vadd.f32 %v566, %v650
    %v652 = vpop.f32.mrb[0].mxu0
    %v653 = vpop.f32.mrb[0].mxu0
    %v654 = vpop.f32.mrb[0].mxu0
    %655 = vdwg.mxu0
    %656 = vst [vmem:[%s19] sm:$0xff] %v651
    %v657 = vmul.f32 %v651, 0.5
    %v658 = vmul.f32 %v657, 1.442695
    %v659 = vpow.pop %v658
    %v660 = vld [vmem:[%s1] sm:$0xff]
    %662 = vrot.lane.b32.xlu0 %v660, 64
    %v663 = vpop.permute.xlu0 %662
    %v665 = vmul.f32 %v659, %v663
    %667 = vrot.lane.b32.xlu0 %v665, 64
    %v668 = vpop.permute.xlu0 %667
    %v670 = vadd.f32 %v651, %v668
    %v671 = vpack.c.bf16 %v670, %v670
    %v672 = vld [vmem:[#allocation11] sm:$0xf]
    %v673 = vld [vmem:[#allocation11 + $0x4] sm:$0xf]
    %v674 = vld [vmem:[#allocation11 + $0x8] sm:$0xf]
    %v675 = vld [vmem:[#allocation11 + $0xc] sm:$0xf]
    %v676 = vld [vmem:[#allocation11 + $0x10] sm:$0xf]
    %v677 = vld [vmem:[#allocation11 + $0x14] sm:$0xf]
    %v678 = vld [vmem:[#allocation11 + $0x18] sm:$0xf]
    %v679 = vld [vmem:[#allocation11 + $0x1c] sm:$0xf]
    %v680 = vld [vmem:[#allocation13] sm:$0x1]
    %v682 = vlaneseq
    %v683 = vshrl.u32 %v682, 7
    %v684 = vsub.s32 0, %v683
    %v685 = vrot.slane %v680, %v684
    %v695 = vunpack.c.l.b16 %v672
    %v696 = vunpack.c.l.b16 %v673
    %v697 = vunpack.c.l.b16 %v674
    %v698 = vunpack.c.l.b16 %v675
    %v699 = vunpack.c.l.b16 %v676
    %v700 = vunpack.c.l.b16 %v677
    %v701 = vunpack.c.l.b16 %v678
    %v702 = vunpack.c.l.b16 %v679
    %v703 = vpack.c.b16 %v696, %v695
    %v704 = vpack.c.b16 %v698, %v697
    %v705 = vpack.c.b16 %v700, %v699
    %v706 = vpack.c.b16 %v702, %v701
    %vm711 = vcmask 523264
    %v713 = vsel %vm711, %v671, 0
    %715 = vmatprep.subr.bf16.mxu0 0
    %716 = vmatpush1.bf16.msra.mxu0 %v703
    %717 = vmatprep.subr.bf16.mxu0 0
    %718 = vmatpush1.bf16.msra.mxu0 %v704
    %719 = vmatprep.subr.bf16.mxu0 0
    %720 = vmatpush1.bf16.msra.mxu0 %v705
    %721 = vmatprep.subr.bf16.mxu0 0
    %722 = vmatpush1.bf16.msra.mxu0 %v706
    %723 = vmatprep.subr.bf16.mxu0 0
    %724 = vmatpush1.bf16.msra.mxu0 0
    %725 = vmatprep.subr.bf16.mxu0 0
    %726 = vmatpush1.bf16.msra.mxu0 0
    %727 = vmatprep.subr.bf16.mxu0 0
    %728 = vmatpush1.bf16.msra.mxu0 0
    %729 = vmatprep.subr.bf16.mxu0 0
    %730 = vmatpush1.bf16.msra.mxu0 0
    %731 = vmatprep.subr.bf16.mxu0 0
    %732 = vmatpush1.bf16.msra.mxu0 0
    %733 = vmatprep.subr.bf16.mxu0 0
    %734 = vmatpush1.bf16.msra.mxu0 0
    %735 = vmatprep.subr.bf16.mxu0 0
    %736 = vmatpush1.bf16.msra.mxu0 0
    %737 = vmatprep.subr.bf16.mxu0 0
    %738 = vmatpush1.bf16.msra.mxu0 0
    %739 = vmatprep.subr.bf16.mxu0 0
    %740 = vmatpush1.bf16.msra.mxu0 0
    %741 = vmatprep.subr.bf16.mxu0 0
    %742 = vmatpush1.bf16.msra.mxu0 0
    %743 = vmatprep.subr.bf16.mxu0 0
    %744 = vmatpush1.bf16.msra.mxu0 0
    %745 = vmatprep.subr.bf16.mxu0 0
    %746 = vmatpush1.bf16.msra.mxu0 0
    %747 = vmatprep.mubr.bf16.mxu0 0
    %748 = vmatmul.mubr.bf16.gmra.mrb[0].mxu0 %v713
    %v749 = vpop.f32.mrb[0].mxu0
    %v750 = vadd.f32 %v685, %v749
    %v751 = vpop.f32.mrb[0].mxu0
    %v752 = vpop.f32.mrb[0].mxu0
    %v753 = vpop.f32.mrb[0].mxu0
    %754 = vdwg.mxu0
    %v755 = vmax.f32 %v750, 0.0
    %v756 = vpack.c.bf16 %v755, %v755
    %v757 = vld [vmem:[%s12] sm:$0xf]
    %v758 = vld [vmem:[%s12 + $0x4] sm:$0xf]
    %v759 = vld [vmem:[%s12 + $0x8] sm:$0xf]
    %v760 = vld [vmem:[%s12 + $0xc] sm:$0xf]
    %v761 = vld [vmem:[%s12 + $0x10] sm:$0xf]
    %v762 = vld [vmem:[%s12 + $0x14] sm:$0xf]
    %v763 = vld [vmem:[%s12 + $0x18] sm:$0xf]
    %v764 = vld [vmem:[%s12 + $0x1c] sm:$0xf]
    %v765 = vld [vmem:[%s12 + $0x20] sm:$0xf]
    %v766 = vld [vmem:[%s12 + $0x24] sm:$0xf]
    %v767 = vld [vmem:[%s12 + $0x28] sm:$0xf]
    %v768 = vld [vmem:[%s12 + $0x2c] sm:$0xf]
    %v769 = vld [vmem:[%s12 + $0x30] sm:$0xf]
    %v770 = vld [vmem:[%s12 + $0x34] sm:$0xf]
    %v771 = vld [vmem:[%s12 + $0x38] sm:$0xf]
    %v772 = vld [vmem:[%s12 + $0x3c] sm:$0xf]
    %v773 = vld [vmem:[#allocation14] sm:$0x1]
    %v775 = vlaneseq
    %v776 = vshrl.u32 %v775, 7
    %v777 = vsub.s32 0, %v776
    %v778 = vrot.slane %v773, %v777
    %v796 = vunpack.c.l.b16 %v757
    %v797 = vunpack.c.l.b16 %v758
    %v798 = vunpack.c.l.b16 %v759
    %v799 = vunpack.c.l.b16 %v760
    %v800 = vunpack.c.l.b16 %v761
    %v801 = vunpack.c.l.b16 %v762
    %v802 = vunpack.c.l.b16 %v763
    %v803 = vunpack.c.l.b16 %v764
    %v804 = vunpack.c.l.b16 %v765
    %v805 = vunpack.c.l.b16 %v766
    %v806 = vunpack.c.l.b16 %v767
    %v807 = vunpack.c.l.b16 %v768
    %v808 = vunpack.c.l.b16 %v769
    %v809 = vunpack.c.l.b16 %v770
    %v810 = vunpack.c.l.b16 %v771
    %v811 = vunpack.c.l.b16 %v772
    %v812 = vpack.c.b16 %v797, %v796
    %v813 = vpack.c.b16 %v799, %v798
    %v814 = vpack.c.b16 %v801, %v800
    %v815 = vpack.c.b16 %v803, %v802
    %v816 = vpack.c.b16 %v805, %v804
    %v817 = vpack.c.b16 %v807, %v806
    %v818 = vpack.c.b16 %v809, %v808
    %v819 = vpack.c.b16 %v811, %v810
    %828 = vmatprep.subr.bf16.mxu0 0
    %829 = vmatpush1.bf16.msra.mxu0 %v812
    %830 = vmatprep.subr.bf16.mxu0 0
    %831 = vmatpush1.bf16.msra.mxu0 %v813
    %832 = vmatprep.subr.bf16.mxu0 0
    %833 = vmatpush1.bf16.msra.mxu0 %v814
    %834 = vmatprep.subr.bf16.mxu0 0
    %835 = vmatpush1.bf16.msra.mxu0 %v815
    %836 = vmatprep.subr.bf16.mxu0 0
    %837 = vmatpush1.bf16.msra.mxu0 %v816
    %838 = vmatprep.subr.bf16.mxu0 0
    %839 = vmatpush1.bf16.msra.mxu0 %v817
    %840 = vmatprep.subr.bf16.mxu0 0
    %841 = vmatpush1.bf16.msra.mxu0 %v818
    %842 = vmatprep.subr.bf16.mxu0 0
    %843 = vmatpush1.bf16.msra.mxu0 %v819
    %844 = vmatprep.subr.bf16.mxu0 0
    %845 = vmatpush1.bf16.msra.mxu0 0
    %846 = vmatprep.subr.bf16.mxu0 0
    %847 = vmatpush1.bf16.msra.mxu0 0
    %848 = vmatprep.subr.bf16.mxu0 0
    %849 = vmatpush1.bf16.msra.mxu0 0
    %850 = vmatprep.subr.bf16.mxu0 0
    %851 = vmatpush1.bf16.msra.mxu0 0
    %852 = vmatprep.subr.bf16.mxu0 0
    %853 = vmatpush1.bf16.msra.mxu0 0
    %854 = vmatprep.subr.bf16.mxu0 0
    %855 = vmatpush1.bf16.msra.mxu0 0
    %856 = vmatprep.subr.bf16.mxu0 0
    %857 = vmatpush1.bf16.msra.mxu0 0
    %858 = vmatprep.subr.bf16.mxu0 0
    %859 = vmatpush1.bf16.msra.mxu0 0
    %860 = vmatprep.mubr.bf16.mxu0 0
    %861 = vmatmul.mubr.bf16.gmra.mrb[0].mxu0 %v756
    %v862 = vpop.f32.mrb[0].mxu0
    %v863 = vadd.f32 %v778, %v862
    %v864 = vpop.f32.mrb[0].mxu0
    %v865 = vpop.f32.mrb[0].mxu0
    %v866 = vpop.f32.mrb[0].mxu0
    %867 = vdwg.mxu0
    %v868 = vmax.f32 %v863, 0.0
    %v869 = vpack.c.bf16 %v868, %v868
    %v870 = vld [vmem:[#allocation16] sm:$0xf]
    %v871 = vld [vmem:[#allocation16 + $0x4] sm:$0xf]
    %v872 = vld [vmem:[#allocation16 + $0x8] sm:$0xf]
    %v873 = vld [vmem:[#allocation16 + $0xc] sm:$0xf]
    %v874 = vld [vmem:[#allocation16 + $0x10] sm:$0xf]
    %v875 = vld [vmem:[#allocation16 + $0x14] sm:$0xf]
    %v876 = vld [vmem:[#allocation16 + $0x18] sm:$0xf]
    %v877 = vld [vmem:[#allocation16 + $0x1c] sm:$0xf]
    %v878 = vld [vmem:[#allocation16 + $0x20] sm:$0xf]
    %v879 = vld [vmem:[#allocation16 + $0x24] sm:$0xf]
    %v880 = vld [vmem:[#allocation16 + $0x28] sm:$0xf]
    %v881 = vld [vmem:[#allocation16 + $0x2c] sm:$0xf]
    %v882 = vld [vmem:[#allocation16 + $0x30] sm:$0xf]
    %v883 = vld [vmem:[#allocation16 + $0x34] sm:$0xf]
    %v884 = vld [vmem:[#allocation16 + $0x38] sm:$0xf]
    %v885 = vld [vmem:[#allocation16 + $0x3c] sm:$0xf]
    %v886 = vld [vmem:[#allocation17] sm:$0x1]
    %v888 = vlaneseq
    %v889 = vshrl.u32 %v888, 7
    %v890 = vsub.s32 0, %v889
    %v891 = vrot.slane %v886, %v890
    %v909 = vunpack.c.l.b16 %v870
    %v910 = vunpack.c.l.b16 %v871
    %v911 = vunpack.c.l.b16 %v872
    %v912 = vunpack.c.l.b16 %v873
    %v913 = vunpack.c.l.b16 %v874
    %v914 = vunpack.c.l.b16 %v875
    %v915 = vunpack.c.l.b16 %v876
    %v916 = vunpack.c.l.b16 %v877
    %v917 = vunpack.c.l.b16 %v878
    %v918 = vunpack.c.l.b16 %v879
    %v919 = vunpack.c.l.b16 %v880
    %v920 = vunpack.c.l.b16 %v881
    %v921 = vunpack.c.l.b16 %v882
    %v922 = vunpack.c.l.b16 %v883
    %v923 = vunpack.c.l.b16 %v884
    %v924 = vunpack.c.l.b16 %v885
    %v925 = vpack.c.b16 %v910, %v909
    %v926 = vpack.c.b16 %v912, %v911
    %v927 = vpack.c.b16 %v914, %v913
    %v928 = vpack.c.b16 %v916, %v915
    %v929 = vpack.c.b16 %v918, %v917
    %v930 = vpack.c.b16 %v920, %v919
    %v931 = vpack.c.b16 %v922, %v921
    %v932 = vpack.c.b16 %v924, %v923
    %941 = vmatprep.subr.bf16.mxu0 0
    %942 = vmatpush1.bf16.msra.mxu0 %v925
    %943 = vmatprep.subr.bf16.mxu0 0
    %944 = vmatpush1.bf16.msra.mxu0 %v926
    %945 = vmatprep.subr.bf16.mxu0 0
    %946 = vmatpush1.bf16.msra.mxu0 %v927
    %947 = vmatprep.subr.bf16.mxu0 0
    %948 = vmatpush1.bf16.msra.mxu0 %v928
    %949 = vmatprep.subr.bf16.mxu0 0
    %950 = vmatpush1.bf16.msra.mxu0 %v929
    %951 = vmatprep.subr.bf16.mxu0 0
    %952 = vmatpush1.bf16.msra.mxu0 %v930
    %953 = vmatprep.subr.bf16.mxu0 0
    %954 = vmatpush1.bf16.msra.mxu0 %v931
    %955 = vmatprep.subr.bf16.mxu0 0
    %956 = vmatpush1.bf16.msra.mxu0 %v932
    %957 = vmatprep.subr.bf16.mxu0 0
    %958 = vmatpush1.bf16.msra.mxu0 0
    %959 = vmatprep.subr.bf16.mxu0 0
    %960 = vmatpush1.bf16.msra.mxu0 0
    %961 = vmatprep.subr.bf16.mxu0 0
    %962 = vmatpush1.bf16.msra.mxu0 0
    %963 = vmatprep.subr.bf16.mxu0 0
    %964 = vmatpush1.bf16.msra.mxu0 0
    %965 = vmatprep.subr.bf16.mxu0 0
    %966 = vmatpush1.bf16.msra.mxu0 0
    %967 = vmatprep.subr.bf16.mxu0 0
    %968 = vmatpush1.bf16.msra.mxu0 0
    %969 = vmatprep.subr.bf16.mxu0 0
    %970 = vmatpush1.bf16.msra.mxu0 0
    %971 = vmatprep.subr.bf16.mxu0 0
    %972 = vmatpush1.bf16.msra.mxu0 0
    %973 = vmatprep.mubr.bf16.mxu0 0
    %974 = vmatmul.mubr.bf16.gmra.mrb[0].mxu0 %v869
    %v975 = vpop.f32.mrb[0].mxu0
    %v976 = vadd.f32 %v891, %v975
    %v977 = vpop.f32.mrb[0].mxu0
    %v978 = vpop.f32.mrb[0].mxu0
    %v979 = vpop.f32.mrb[0].mxu0
    %980 = vdwg.mxu0
    %v981 = vmax.f32 %v976, 0.0
    %v982 = vpack.c.bf16 %v981, %v981
    %v983 = vld [vmem:[#allocation19] sm:$0xf]
    %v984 = vld [vmem:[#allocation19 + $0x4] sm:$0xf]
    %v985 = vld [vmem:[#allocation19 + $0x8] sm:$0xf]
    %v986 = vld [vmem:[#allocation19 + $0xc] sm:$0xf]
    %v987 = vld [vmem:[#allocation19 + $0x10] sm:$0xf]
    %v988 = vld [vmem:[#allocation19 + $0x14] sm:$0xf]
    %v989 = vld [vmem:[#allocation19 + $0x18] sm:$0xf]
    %v990 = vld [vmem:[#allocation19 + $0x1c] sm:$0xf]
    %v991 = vld [vmem:[#allocation19 + $0x20] sm:$0xf]
    %v992 = vld [vmem:[#allocation19 + $0x24] sm:$0xf]
    %v993 = vld [vmem:[#allocation19 + $0x28] sm:$0xf]
    %v994 = vld [vmem:[#allocation19 + $0x2c] sm:$0xf]
    %v995 = vld [vmem:[#allocation19 + $0x30] sm:$0xf]
    %v996 = vld [vmem:[#allocation19 + $0x34] sm:$0xf]
    %v997 = vld [vmem:[#allocation19 + $0x38] sm:$0xf]
    %v998 = vld [vmem:[#allocation19 + $0x3c] sm:$0xf]
    %v999 = vld [vmem:[%s17] sm:$0x1]
    %v1001 = vlaneseq
    %v1002 = vshrl.u32 %v1001, 7
    %v1003 = vsub.s32 0, %v1002
    %v1004 = vrot.slane %v999, %v1003
    %v1022 = vunpack.c.l.b16 %v983
    %v1023 = vunpack.c.l.b16 %v984
    %v1024 = vunpack.c.l.b16 %v985
    %v1025 = vunpack.c.l.b16 %v986
    %v1026 = vunpack.c.l.b16 %v987
    %v1027 = vunpack.c.l.b16 %v988
    %v1028 = vunpack.c.l.b16 %v989
    %v1029 = vunpack.c.l.b16 %v990
    %v1030 = vunpack.c.l.b16 %v991
    %v1031 = vunpack.c.l.b16 %v992
    %v1032 = vunpack.c.l.b16 %v993
    %v1033 = vunpack.c.l.b16 %v994
    %v1034 = vunpack.c.l.b16 %v995
    %v1035 = vunpack.c.l.b16 %v996
    %v1036 = vunpack.c.l.b16 %v997
    %v1037 = vunpack.c.l.b16 %v998
    %v1038 = vpack.c.b16 %v1023, %v1022
    %v1039 = vpack.c.b16 %v1025, %v1024
    %v1040 = vpack.c.b16 %v1027, %v1026
    %v1041 = vpack.c.b16 %v1029, %v1028
    %v1042 = vpack.c.b16 %v1031, %v1030
    %v1043 = vpack.c.b16 %v1033, %v1032
    %v1044 = vpack.c.b16 %v1035, %v1034
    %v1045 = vpack.c.b16 %v1037, %v1036
    %1054 = vmatprep.subr.bf16.mxu0 0
    %1055 = vmatpush1.bf16.msra.mxu0 %v1038
    %1056 = vmatprep.subr.bf16.mxu0 0
    %1057 = vmatpush1.bf16.msra.mxu0 %v1039
    %1058 = vmatprep.subr.bf16.mxu0 0
    %1059 = vmatpush1.bf16.msra.mxu0 %v1040
    %1060 = vmatprep.subr.bf16.mxu0 0
    %1061 = vmatpush1.bf16.msra.mxu0 %v1041
    %1062 = vmatprep.subr.bf16.mxu0 0
    %1063 = vmatpush1.bf16.msra.mxu0 %v1042
    %1064 = vmatprep.subr.bf16.mxu0 0
    %1065 = vmatpush1.bf16.msra.mxu0 %v1043
    %1066 = vmatprep.subr.bf16.mxu0 0
    %1067 = vmatpush1.bf16.msra.mxu0 %v1044
    %1068 = vmatprep.subr.bf16.mxu0 0
    %1069 = vmatpush1.bf16.msra.mxu0 %v1045
    %1070 = vmatprep.subr.bf16.mxu0 0
    %1071 = vmatpush1.bf16.msra.mxu0 0
    %1072 = vmatprep.subr.bf16.mxu0 0
    %1073 = vmatpush1.bf16.msra.mxu0 0
    %1074 = vmatprep.subr.bf16.mxu0 0
    %1075 = vmatpush1.bf16.msra.mxu0 0
    %1076 = vmatprep.subr.bf16.mxu0 0
    %1077 = vmatpush1.bf16.msra.mxu0 0
    %1078 = vmatprep.subr.bf16.mxu0 0
    %1079 = vmatpush1.bf16.msra.mxu0 0
    %1080 = vmatprep.subr.bf16.mxu0 0
    %1081 = vmatpush1.bf16.msra.mxu0 0
    %1082 = vmatprep.subr.bf16.mxu0 0
    %1083 = vmatpush1.bf16.msra.mxu0 0
    %1084 = vmatprep.subr.bf16.mxu0 0
    %1085 = vmatpush1.bf16.msra.mxu0 0
    %1086 = vmatprep.mubr.bf16.mxu0 0
    %1087 = vmatmul.mubr.bf16.gmra.mrb[0].mxu0 %v982
    %v1088 = vpop.f32.mrb[0].mxu0
    %v1089 = vadd.f32 %v1004, %v1088
    %v1090 = vpop.f32.mrb[0].mxu0
    %v1091 = vpop.f32.mrb[0].mxu0
    %v1092 = vpop.f32.mrb[0].mxu0
    %1093 = vdwg.mxu0
    %v1094 = vxor.u32 %v1089, 2147483648
    %v1095 = vmul.f32 %v1094, 1.442695
    %v1096 = vpow.pop %v1095
    %v1097 = vadd.f32 %v1096, 1.0
    %v1098 = vrcp.pop %v1097
    %v1099 = vmul.f32 1.0, %v1098
    %1100 = vst [vmem:[#allocation20] sm:$0xff] %v1099
    // Predicated region
    $region118: #{fwd.1} parent=1 // pred_check
      _
    $region119: #{fwd.1} parent=1 // pred_check_branch
      %1102 = sbr.rel (0) target = $region121
    $region120: #{fwd.1} parent=1 // pred_region
      %s1104 = ssub.s32 128, 128
      %1105 = vsyncadd [#allocation4], %s1104
      %s1107 = sshll.u32 [#allocation20], 4
      %s1108 = int_to_ptr.vmem [resolvable:$true] %s1107
      %1110 = dma.vmem_to_hbm [thread:$0]  %s1108, 128, %s18, [#allocation4]
    $region121: #{fwd.1} parent=1 // pred_fallthru
      _
    // Predicated region
    $region122: #{fwd.1} parent=1 // pred_check
      _
    $region123: #{fwd.1} parent=1 // pred_check_branch
      %1112 = sbr.rel (0) target = $region125
    $region124: #{fwd.1} parent=1 // pred_region
      _
    $region125: #{fwd.1} parent=1 // pred_fallthru
      _
    // Predicated region
    $region126: #{fwd.1} parent=1 // pred_check
      _
    $region127: #{fwd.1} parent=1 // pred_check_branch
      %1114 = sbr.rel (0) target = $region129
    $region128: #{fwd.1} parent=1 // pred_region
      %1115 = dma.done [#allocation4], 128
    $region129: #{fwd.1} parent=1 // pred_fallthru
      _
    // Predicated region
    $region130: #{fwd.1} parent=1 // pred_check
      _
    $region131: #{fwd.1} parent=1 // pred_check_branch
      %1117 = sbr.rel (0) target = $region133
    $region132: #{fwd.1} parent=1 // pred_region
      _
    $region133: #{fwd.1} parent=1 // pred_fallthru
      _
    %1118 = vsyncpa [#allocation3], 1
    %1119 = vsyncpa [#allocation6], 1
    %1120 = vsyncpa [#allocation9], 1
    %1121 = vsyncpa [#allocation12], 1
    %1122 = vsyncpa [#allocation15], 1
    %1123 = vsyncpa [#allocation18], 1
    %1124 = vsyncpa [#allocation4], 1

</llo_original>
